<compile_context>
chip_gen: v7x
topology: tpu7x:2x2x1
jax: 0.10.0
libtpu: 0.0.40
codegen_flags: <defaults>
</compile_context>

<pallas_src>
import functools

import jax
import jax.numpy as jnp
from jax.experimental import pallas as pl
from jax.experimental.pallas import tpu as pltpu


def _cdiv(a, b):
    return -(-a // b)


def _weighted_ce_kernel(pred_ref, labels_ref, weight_ref,
                        num_ref, den_ref,
                        num_acc, den_acc,
                        *, n_valid, tiles_per_core):
    """One (C, tile_n) tile of weighted CE.

    pred_ref: (C, T) logits, labels_ref: (1, T) int32, weight_ref: (C, 1),
    num_ref/den_ref: (1, 8, 128) per-parallel-slice partial outputs,
    num_acc/den_acc: (1, 1) resident f32 accumulators.
    """
    p = pl.program_id(0)          # megacore slice ("parallel")
    i = pl.program_id(1)          # tile within the slice ("arbitrary")
    c, tile_n = pred_ref.shape

    @pl.when(i == 0)
    def _():
        num_acc[...] = jnp.zeros_like(num_acc)
        den_acc[...] = jnp.zeros_like(den_acc)

    # Global sample index of every lane in this tile; mask ragged / clamped lanes.
    col = (jax.lax.broadcasted_iota(jnp.int32, (1, tile_n), 1)
           + (p * tiles_per_core + i) * tile_n)
    valid = col < n_valid                              # (1, T) bool
    validf = valid.astype(jnp.float32)

    # Mask BEFORE exp so garbage in the ragged tail cannot produce NaN/Inf.
    pred = jnp.where(valid, pred_ref[...].astype(jnp.float32), 0.0)   # (C, T)
    labels = labels_ref[...]                                          # (1, T)
    w = weight_ref[...].astype(jnp.float32)                           # (C, 1)

    # Numerically-stable log-softmax along the small sublane (class) axis.
    m = jnp.max(pred, axis=0, keepdims=True)           # (1, T)
    z = pred - m                                       # (C, T)
    lse = jnp.log(jnp.sum(jnp.exp(z), axis=0, keepdims=True))   # (1, T)
    logp = z - lse                                     # (C, T)

    # Gather logp[label] and w[label] via class-row compares (pure VPU, no MXU).
    row = jax.lax.broadcasted_iota(jnp.int32, (c, tile_n), 0)
    onehot = (row == labels).astype(jnp.float32)       # (C, T)
    logp_lab = jnp.sum(onehot * logp, axis=0, keepdims=True)    # (1, T)
    w_lab = jnp.sum(onehot * w, axis=0, keepdims=True)          # (1, T)

    num_acc[...] += jnp.sum(-w_lab * logp_lab * validf, axis=1, keepdims=True)
    den_acc[...] += jnp.sum(w_lab * validf, axis=1, keepdims=True)

    @pl.when(i == pl.num_programs(1) - 1)
    def _():
        # (1, 8, 128) output blocks keep the out_spec tile-aligned; every entry
        # of the block holds the same scalar partial.
        num_ref[...] = jnp.broadcast_to(num_acc[...].reshape(1, 1, 1), num_ref.shape)
        den_ref[...] = jnp.broadcast_to(den_acc[...].reshape(1, 1, 1), den_ref.shape)


def ce_loss(predicted, labels, weight_ce, *, tile_n=32768,
            pred_vmem_budget_bytes=8 * 1024 * 1024):
    """predicted: (N, C) float; labels: (N,) int; weight_ce: (C,) float."""
    n, c = predicted.shape

    # Lane-dense layout: ship logits as (C, N). One fused XLA transpose pass;
    # NO extra zero-pad materialization (ragged tail handled in-kernel).
    # TODO(synk): if the producer can emit logits already as (C, N), pass them
    # straight through and drop this transpose (saves one HBM pass).
    pred_t = predicted.T
    labels_r = labels.astype(jnp.int32).reshape(1, n)
    w2 = weight_ce.astype(jnp.float32).reshape(c, 1)

    # Tile sizing: large lane-aligned tiles amortize per-grid-step overhead;
    # cap so the double-buffered pred block stays well under the scoped-VMEM
    # limit on every generation (16 MiB default on v5e, 32 MiB on v6e/v7x).
    dtype_bytes = jnp.dtype(predicted.dtype).itemsize
    c_pad = ((c + 7) // 8) * 8                      # sublane padding in VMEM
    cap_by_vmem = pred_vmem_budget_bytes // (2 * c_pad * dtype_bytes)
    tile_cap = max(128, min(int(tile_n), (int(cap_by_vmem) // 128) * 128))
    # TODO(synk): for vocab-scale C the whole class axis no longer fits one
    # block; that would need a second grid axis with a streamed logsumexp.

    if n <= tile_cap:
        tile_eff = n            # single block: block dims == full array dims
        n_tiles = 1
    else:
        tile_eff = tile_cap     # multiple of 128; last block may be ragged
        n_tiles = _cdiv(n, tile_eff)

    # Two-way "parallel" leading axis -> both v7x TensorCores; on v5e/v6e it is
    # just a cheap outer loop of length 2.
    n_par = 2 if n_tiles >= 2 else 1
    tiles_per_core = _cdiv(n_tiles, n_par)
    last_block = n_tiles - 1

    def data_map(p, i):
        # Clamp so a core's trailing (fully-masked) iterations re-read the last
        # real block instead of DMA-ing past the end of the array.
        return (0, jnp.minimum(p * tiles_per_core + i, last_block))

    kernel = functools.partial(_weighted_ce_kernel, n_valid=n,
                               tiles_per_core=tiles_per_core)

    num_out, den_out = pl.pallas_call(
        kernel,
        out_shape=(jax.ShapeDtypeStruct((n_par, 8, 128), jnp.float32),
                   jax.ShapeDtypeStruct((n_par, 8, 128), jnp.float32)),
        grid_spec=pltpu.PrefetchScalarGridSpec(
            num_scalar_prefetch=0,
            grid=(n_par, tiles_per_core),
            in_specs=[
                pl.BlockSpec((c, tile_eff), data_map),
                pl.BlockSpec((1, tile_eff), data_map),
                pl.BlockSpec(memory_space=pltpu.MemorySpace.VMEM),  # (C,1) weights
            ],
            out_specs=[
                pl.BlockSpec((1, 8, 128), lambda p, i: (p, 0, 0)),
                pl.BlockSpec((1, 8, 128), lambda p, i: (p, 0, 0)),
            ],
            scratch_shapes=[pltpu.VMEM((1, 1), jnp.float32),
                            pltpu.VMEM((1, 1), jnp.float32)],
        ),
        compiler_params=pltpu.CompilerParams(
            dimension_semantics=("parallel", "arbitrary"),
            vmem_limit_bytes=32 * 1024 * 1024,
        ),
    )(pred_t, labels_r, w2)

    num_tot = jnp.sum(num_out[:, 0, 0])
    den_tot = jnp.sum(den_out[:, 0, 0])
    # PyTorch reduction='mean' with class weights divides by the summed weights
    # of the selected classes.
    return num_tot / den_tot


def ce_loss_ref(predicted, labels, weight_ce):
    """Pure-JAX reference matching nn.CrossEntropyLoss(weight, reduction='mean')."""
    logp = jax.nn.log_softmax(predicted, axis=1)
    logp_lab = jnp.take_along_axis(logp, labels[:, None], axis=1)[:, 0]
    w_lab = weight_ce[labels]
    return jnp.sum(-w_lab * logp_lab) / jnp.sum(w_lab)


if __name__ == "__main__":
    key = jax.random.PRNGKey(0)
    k1, k2 = jax.random.split(key)

    # (N, C) logits with integer class labels, as nn.CrossEntropyLoss expects.
    N, C = 300, 4   # N deliberately not a multiple of 128 -> exercises masking
    predicted = jax.random.normal(k1, (N, C), dtype=jnp.float32)
    labels = jax.random.randint(k2, (N,), 0, C, dtype=jnp.int32)
    weight_ce = jnp.array([1.0, 2.0, 0.5, 1.5], dtype=jnp.float32)

    ref = ce_loss_ref(predicted, labels, weight_ce)

    # Config A: default large tiles -> single full-extent block.
    out_a = jax.block_until_ready(ce_loss(predicted, labels, weight_ce))
    assert jnp.allclose(out_a, ref, rtol=1e-5, atol=1e-5), (out_a, ref)

    # Config B: small tiles -> multi-tile grid with a ragged last block, the
    # 2-way "parallel" split, and a clamped fully-masked trailing iteration.
    out_b = jax.block_until_ready(ce_loss(predicted, labels, weight_ce, tile_n=128))
    assert jnp.allclose(out_b, ref, rtol=1e-5, atol=1e-5), (out_b, ref)

    print("KERNEL_OK")
</pallas_src>

<mosaic_0001>
module attributes {stable_mosaic.version = 11 : i64} {
  func.func @_weighted_ce_kernel(%arg0: i32, %arg1: i32, %arg2: memref<4x300xf32, #tpu.memory_space<vmem>>, %arg3: memref<1x300xi32, #tpu.memory_space<vmem>>, %arg4: memref<4x1xf32, #tpu.memory_space<vmem>>, %arg5: memref<1x8x128xf32, #tpu.memory_space<vmem>>, %arg6: memref<1x8x128xf32, #tpu.memory_space<vmem>>, %arg7: memref<1x1xf32, #tpu.memory_space<vmem>>, %arg8: memref<1x1xf32, #tpu.memory_space<vmem>>) attributes {dimension_semantics = [#tpu.dimension_semantics<parallel>, #tpu.dimension_semantics<arbitrary>], iteration_bounds = array<i64: 1, 1>, scalar_prefetch = 0 : i64, scratch_operands = 2 : i64, tpu.core_type = #tpu.core_type<tc>, window_params = [{transform_indices = @transform_0, window_bounds = array<i64: 4, 300>}, {transform_indices = @transform_1, window_bounds = array<i64: 1, 300>}, {pipeline_mode = #tpu.pipeline_mode<synchronous>, transform_indices = @transform_2, window_bounds = array<i64: 4, 1>}, {transform_indices = @transform_3, window_bounds = array<i64: 1, 8, 128>}, {transform_indices = @transform_4, window_bounds = array<i64: 1, 8, 128>}]} {
    %c0_i32 = arith.constant 0 : i32
    %0 = arith.cmpi eq, %arg1, %c0_i32 : i32
    %1 = arith.extui %0 : i1 to i32
    %c0_i32_0 = arith.constant 0 : i32
    %2 = arith.cmpi ne, %1, %c0_i32_0 : i32
    scf.if %2 {
      %cst_24 = arith.constant 0.000000e+00 : f32
      %60 = vector.broadcast %cst_24 : f32 to vector<1x1xf32>
      %c0_25 = arith.constant 0 : index
      %c0_26 = arith.constant 0 : index
      %61 = vector.load %arg7[%c0_25, %c0_26] : memref<1x1xf32, #tpu.memory_space<vmem>>, vector<1x1xf32>
      tpu.vector_store %arg7[%c0_25, %c0_26], %60 {strides = array<i32>} : memref<1x1xf32, #tpu.memory_space<vmem>>, vector<1x1xf32>,
      %cst_27 = arith.constant 0.000000e+00 : f32
      %62 = vector.broadcast %cst_27 : f32 to vector<1x1xf32>
      %c0_28 = arith.constant 0 : index
      %c0_29 = arith.constant 0 : index
      %63 = vector.load %arg8[%c0_28, %c0_29] : memref<1x1xf32, #tpu.memory_space<vmem>>, vector<1x1xf32>
      tpu.vector_store %arg8[%c0_28, %c0_29], %62 {strides = array<i32>} : memref<1x1xf32, #tpu.memory_space<vmem>>, vector<1x1xf32>,
    } else {
    }
    %3 = tpu.iota {dimensions = array<i32: 1>} : vector<1x300xi32>
    %c1_i32 = arith.constant 1 : i32
    %4 = arith.muli %arg0, %c1_i32 : i32
    %5 = arith.addi %4, %arg1 : i32
    %c300_i32 = arith.constant 300 : i32
    %6 = arith.muli %5, %c300_i32 : i32
    %7 = vector.broadcast %6 : i32 to vector<1x300xi32>
    %8 = arith.addi %3, %7 : vector<1x300xi32>
    %c300_i32_1 = arith.constant 300 : i32
    %9 = vector.broadcast %c300_i32_1 : i32 to vector<1x300xi32>
    %10 = arith.cmpi slt, %8, %9 : vector<1x300xi32>
    %11 = arith.extui %10 : vector<1x300xi1> to vector<1x300xi32>
    %12 = arith.sitofp %11 : vector<1x300xi32> to vector<1x300xf32>
    %c0 = arith.constant 0 : index
    %c0_2 = arith.constant 0 : index
    %13 = vector.load %arg2[%c0, %c0_2] : memref<4x300xf32, #tpu.memory_space<vmem>>, vector<4x300xf32>
    %cst = arith.constant 0.000000e+00 : f32
    %14 = vector.shape_cast %10 : vector<1x300xi1> to vector<1x300xi1>
    %15 = vector.broadcast %14 : vector<1x300xi1> to vector<4x300xi1>
    %16 = vector.broadcast %cst : f32 to vector<4x300xf32>
    %17 = arith.select %15, %13, %16 : vector<4x300xi1>, vector<4x300xf32>
    %c0_3 = arith.constant 0 : index
    %c0_4 = arith.constant 0 : index
    %18 = vector.load %arg3[%c0_3, %c0_4] : memref<1x300xi32, #tpu.memory_space<vmem>>, vector<1x300xi32>
    %c0_5 = arith.constant 0 : index
    %c0_6 = arith.constant 0 : index
    %19 = vector.load %arg4[%c0_5, %c0_6] : memref<4x1xf32, #tpu.memory_space<vmem>>, vector<4x1xf32>
    %cst_7 = arith.constant dense<0xFF800000> : vector<300xf32>
    %20 = vector.multi_reduction <maximumf>, %17, %cst_7 [0] : vector<4x300xf32> to vector<300xf32>
    %21 = vector.shape_cast %20 : vector<300xf32> to vector<1x300xf32>
    %22 = vector.broadcast %21 : vector<1x300xf32> to vector<4x300xf32>
    %23 = arith.subf %17, %22 : vector<4x300xf32>
    %24 = math.exp %23 : vector<4x300xf32>
    %cst_8 = arith.constant dense<0.000000e+00> : vector<300xf32>
    %25 = vector.multi_reduction <add>, %24, %cst_8 [0] : vector<4x300xf32> to vector<300xf32>
    %26 = vector.shape_cast %25 : vector<300xf32> to vector<1x300xf32>
    %27 = math.log %26 : vector<1x300xf32>
    %28 = vector.broadcast %27 : vector<1x300xf32> to vector<4x300xf32>
    %29 = arith.subf %23, %28 : vector<4x300xf32>
    %30 = tpu.iota {dimensions = array<i32: 0>} : vector<4x300xi32>
    %31 = vector.broadcast %18 : vector<1x300xi32> to vector<4x300xi32>
    %32 = arith.cmpi eq, %30, %31 : vector<4x300xi32>
    %33 = arith.extui %32 : vector<4x300xi1> to vector<4x300xi32>
    %34 = arith.sitofp %33 : vector<4x300xi32> to vector<4x300xf32>
    %35 = arith.mulf %34, %29 : vector<4x300xf32>
    %cst_9 = arith.constant dense<0.000000e+00> : vector<300xf32>
    %36 = vector.multi_reduction <add>, %35, %cst_9 [0] : vector<4x300xf32> to vector<300xf32>
    %37 = vector.shape_cast %36 : vector<300xf32> to vector<1x300xf32>
    %38 = vector.broadcast %19 : vector<4x1xf32> to vector<4x300xf32>
    %39 = arith.mulf %34, %38 : vector<4x300xf32>
    %cst_10 = arith.constant dense<0.000000e+00> : vector<300xf32>
    %40 = vector.multi_reduction <add>, %39, %cst_10 [0] : vector<4x300xf32> to vector<300xf32>
    %41 = vector.shape_cast %40 : vector<300xf32> to vector<1x300xf32>
    %c0_11 = arith.constant 0 : index
    %c0_12 = arith.constant 0 : index
    %42 = vector.load %arg7[%c0_11, %c0_12] : memref<1x1xf32, #tpu.memory_space<vmem>>, vector<1x1xf32>
    %cst_13 = arith.constant 0.000000e+00 : f32
    %43 = vector.broadcast %cst_13 : f32 to vector<1x300xf32>
    %44 = arith.subf %43, %41 : vector<1x300xf32>
    %45 = arith.mulf %44, %37 : vector<1x300xf32>
    %46 = arith.mulf %45, %12 : vector<1x300xf32>
    %cst_14 = arith.constant dense<0.000000e+00> : vector<1xf32>
    %47 = vector.multi_reduction <add>, %46, %cst_14 [1] : vector<1x300xf32> to vector<1xf32>
    %48 = vector.shape_cast %47 : vector<1xf32> to vector<1x1xf32>
    %49 = arith.addf %42, %48 : vector<1x1xf32>
    %c0_15 = arith.constant 0 : index
    %c0_16 = arith.constant 0 : index
    %50 = vector.load %arg7[%c0_15, %c0_16] : memref<1x1xf32, #tpu.memory_space<vmem>>, vector<1x1xf32>
    tpu.vector_store %arg7[%c0_15, %c0_16], %49 {strides = array<i32>} : memref<1x1xf32, #tpu.memory_space<vmem>>, vector<1x1xf32>,
    %c0_17 = arith.constant 0 : index
    %c0_18 = arith.constant 0 : index
    %51 = vector.load %arg8[%c0_17, %c0_18] : memref<1x1xf32, #tpu.memory_space<vmem>>, vector<1x1xf32>
    %52 = arith.mulf %41, %12 : vector<1x300xf32>
    %cst_19 = arith.constant dense<0.000000e+00> : vector<1xf32>
    %53 = vector.multi_reduction <add>, %52, %cst_19 [1] : vector<1x300xf32> to vector<1xf32>
    %54 = vector.shape_cast %53 : vector<1xf32> to vector<1x1xf32>
    %55 = arith.addf %51, %54 : vector<1x1xf32>
    %c0_20 = arith.constant 0 : index
    %c0_21 = arith.constant 0 : index
    %56 = vector.load %arg8[%c0_20, %c0_21] : memref<1x1xf32, #tpu.memory_space<vmem>>, vector<1x1xf32>
    tpu.vector_store %arg8[%c0_20, %c0_21], %55 {strides = array<i32>} : memref<1x1xf32, #tpu.memory_space<vmem>>, vector<1x1xf32>,
    %c0_i32_22 = arith.constant 0 : i32
    %57 = arith.cmpi eq, %arg1, %c0_i32_22 : i32
    %58 = arith.extui %57 : i1 to i32
    %c0_i32_23 = arith.constant 0 : i32
    %59 = arith.cmpi ne, %58, %c0_i32_23 : i32
    scf.if %59 {
      %c0_24 = arith.constant 0 : index
      %c0_25 = arith.constant 0 : index
      %60 = vector.load %arg7[%c0_24, %c0_25] : memref<1x1xf32, #tpu.memory_space<vmem>>, vector<1x1xf32>
      %61 = vector.shape_cast %60 : vector<1x1xf32> to vector<1x1x1xf32>
      %62 = vector.shape_cast %61 : vector<1x1x1xf32> to vector<1x1x1xf32>
      %63 = vector.broadcast %62 : vector<1x1x1xf32> to vector<1x8x128xf32>
      %c0_26 = arith.constant 0 : index
      %c0_27 = arith.constant 0 : index
      %c0_28 = arith.constant 0 : index
      %64 = vector.load %arg5[%c0_26, %c0_27, %c0_28] : memref<1x8x128xf32, #tpu.memory_space<vmem>>, vector<1x8x128xf32>
      tpu.vector_store %arg5[%c0_26, %c0_27, %c0_28], %63 {strides = array<i32>} : memref<1x8x128xf32, #tpu.memory_space<vmem>>, vector<1x8x128xf32>,
      %c0_29 = arith.constant 0 : index
      %c0_30 = arith.constant 0 : index
      %65 = vector.load %arg8[%c0_29, %c0_30] : memref<1x1xf32, #tpu.memory_space<vmem>>, vector<1x1xf32>
      %66 = vector.shape_cast %65 : vector<1x1xf32> to vector<1x1x1xf32>
      %67 = vector.shape_cast %66 : vector<1x1x1xf32> to vector<1x1x1xf32>
      %68 = vector.broadcast %67 : vector<1x1x1xf32> to vector<1x8x128xf32>
      %c0_31 = arith.constant 0 : index
      %c0_32 = arith.constant 0 : index
      %c0_33 = arith.constant 0 : index
      %69 = vector.load %arg6[%c0_31, %c0_32, %c0_33] : memref<1x8x128xf32, #tpu.memory_space<vmem>>, vector<1x8x128xf32>
      tpu.vector_store %arg6[%c0_31, %c0_32, %c0_33], %68 {strides = array<i32>} : memref<1x8x128xf32, #tpu.memory_space<vmem>>, vector<1x8x128xf32>,
    } else {
    }
    return
  }
  func.func @transform_0(%arg0: i32, %arg1: i32) -> (i32, i32) {
    %c1_i32 = arith.constant 1 : i32
    %0 = arith.muli %arg0, %c1_i32 : i32
    %1 = arith.addi %0, %arg1 : i32
    %c0_i32 = arith.constant 0 : i32
    %2 = arith.minsi %1, %c0_i32 : i32
    %c0_i32_0 = arith.constant 0 : i32
    %c0_i32_1 = arith.constant 0 : i32
    return %c0_i32_0, %2 : i32, i32
  }
  func.func @transform_1(%arg0: i32, %arg1: i32) -> (i32, i32) {
    %c1_i32 = arith.constant 1 : i32
    %0 = arith.muli %arg0, %c1_i32 : i32
    %1 = arith.addi %0, %arg1 : i32
    %c0_i32 = arith.constant 0 : i32
    %2 = arith.minsi %1, %c0_i32 : i32
    %c0_i32_0 = arith.constant 0 : i32
    %c0_i32_1 = arith.constant 0 : i32
    return %c0_i32_0, %2 : i32, i32
  }
  func.func @transform_2(%arg0: i32, %arg1: i32) -> (i32, i32) {
    %c0_i32 = arith.constant 0 : i32
    %c0_i32_0 = arith.constant 0 : i32
    %c0_i32_1 = arith.constant 0 : i32
    return %c0_i32, %c0_i32_0 : i32, i32
  }
  func.func @transform_3(%arg0: i32, %arg1: i32) -> (i32, i32, i32) {
    %c0_i32 = arith.constant 0 : i32
    %c0_i32_0 = arith.constant 0 : i32
    %c0_i32_1 = arith.constant 0 : i32
    return %arg0, %c0_i32, %c0_i32_0 : i32, i32, i32
  }
  func.func @transform_4(%arg0: i32, %arg1: i32) -> (i32, i32, i32) {
    %c0_i32 = arith.constant 0 : i32
    %c0_i32_0 = arith.constant 0 : i32
    %c0_i32_1 = arith.constant 0 : i32
    return %arg0, %c0_i32, %c0_i32_0 : i32, i32, i32
  }
}

</mosaic_0001>

<llo_original>
// kernel: tpu_custom_call.1
$region0: #{tpu_custom_call.1}
  #allocation0 [shape = 'u32[]', space=smem, size = 0x4, offset = 0x4, fixed_abs, tag = 'smem constant byte address 0x4 - core index']
  #allocation1 [shape = 'u32[144,128]{1,0:T(1,128)}', space=vmem, size = 0x12000, scoped, tag = 'internal scratch']
  #allocation2 [shape = 'f32[1,1]{1,0:T(1,128)}', space=vmem, size = 0x200, scoped, tag = 'scratch operand']
  #allocation3 [shape = 'f32[1,1]{1,0:T(1,128)}', space=vmem, size = 0x200, scoped, tag = 'scratch operand']
  %s0 = inlined_call_operand.hbm [shape: f32[4,300], index: 0, kind: input, shape index: {}]
  %s1 = inlined_call_operand.vmem [shape: s32[1,300], index: 1, kind: input, shape index: {}]
  %s2 = inlined_call_operand.vmem [shape: f32[4,1], index: 2, kind: input, shape index: {}]
  %s3 = inlined_call_operand.hbm [shape: f32[1,8,128], index: 3, kind: output, shape index: {0}]
  %s4 = inlined_call_operand.hbm [shape: f32[1,8,128], index: 4, kind: output, shape index: {1}]
  %5 = xla_tuple %s3, %s4
  %s6 = sld [smem:[#allocation0]]
  $region42: #{tpu_custom_call.1} parent=0
    _
  %s8 = ssub.s32 1, %s6
  %s9 = scalar_select 0, %s8, %s6
  $region1: #{tpu_custom_call.1} parent=0
    #allocation4 [shape = 'u8[6144]{0}', space=vmem, size = 0x1800, scoped, tag = 'input window, operand 0, single buffered']
    #allocation5 [shape = 's32[1]{0}', space=sflag, size = 0x4, scoped, tag = 'scoped memory for tpu_custom_call.1']
    #allocation6 [shape = 's32[1]{0}', space=sflag, size = 0x4, scoped, tag = 'scoped memory for tpu_custom_call.1']
    #allocation7 [shape = 'u8[4096]{0}', space=vmem, size = 0x1000, scoped, tag = 'output window, operand 0, single buffered']
    #allocation8 [shape = 'u8[4096]{0}', space=vmem, size = 0x1000, scoped, tag = 'output window, operand 1, single buffered']
    #allocation9 [shape = 's32[1]{0}', space=sflag, size = 0x4, scoped, tag = 'scoped memory for tpu_custom_call.1']
    %10 = vsyncpa [#allocation5], 0
    %11 = vsyncpa [#allocation6], 0
    %12 = vsyncpa [#allocation9], 0
    // Predicated region
    $region2: #{tpu_custom_call.1} parent=1 // pred_check
      _
    $region3: #{tpu_custom_call.1} parent=1 // pred_check_branch
      %14 = sbr.rel (0) target = $region5
    $region4: #{tpu_custom_call.1} parent=1 // pred_region
      %s15 = sadd.s32 0, 0
      %p16 = scmp.lt.s32.totalorder %s15, 0
      %s17 = scalar_select %p16, %s15, 0
      %s18 = smul.u32 3, %s17
      %s20 = ssub.s32 192, 192
      %21 = vsyncadd [#allocation5], %s20
      %s22 = smul.addr %s18, 64
      %s23 = scalar_lea.hbm %s0, %s22
      %s25 = sshll.u32 [#allocation4], 4
      %s26 = int_to_ptr.vmem [resolvable:$true] %s25
      %28 = dma.hbm_to_vmem [thread:$0]  %s23, 192, %s26, [#allocation5]
    $region5: #{tpu_custom_call.1} parent=1 // pred_fallthru
      _
    // Predicated region
    $region6: #{tpu_custom_call.1} parent=1 // pred_check
      _
    $region7: #{tpu_custom_call.1} parent=1 // pred_check_branch
      %30 = sbr.rel (0) target = $region9
    $region8: #{tpu_custom_call.1} parent=1 // pred_region
      %s31 = sadd.s32 0, 0
      %p32 = scmp.lt.s32.totalorder %s31, 0
      %s33 = scalar_select %p32, %s31, 0
      %s34 = smul.u32 3, %s33
      %p35 = scmp.lt.s32.totalorder %s34, 2
      %s36 = scalar_select %p35, %s34, 2
      %s37 = scalar_lea.vmem %s1, %s36
      %s38 = sadd.s32 0, 0
      %p39 = scmp.lt.s32.totalorder %s38, 0
      %s40 = scalar_select %p39, %s38, 0
      %s41 = smul.u32 3, %s40
    $region9: #{tpu_custom_call.1} parent=1 // pred_fallthru
      _
    // Predicated region
    $region10: #{tpu_custom_call.1} parent=1 // pred_check
      _
    $region11: #{tpu_custom_call.1} parent=1 // pred_check_branch
      %43 = sbr.rel (0) target = $region13
    $region12: #{tpu_custom_call.1} parent=1 // pred_region
      _
    $region13: #{tpu_custom_call.1} parent=1 // pred_fallthru
      _
    // Predicated region
    $region14: #{tpu_custom_call.1} parent=1 // pred_check
      _
    $region15: #{tpu_custom_call.1} parent=1 // pred_check_branch
      %45 = sbr.rel (0) target = $region17
    $region16: #{tpu_custom_call.1} parent=1 // pred_region
      %46 = dma.done [#allocation5], 192
    $region17: #{tpu_custom_call.1} parent=1 // pred_fallthru
      _
    %s47 = sadd.s32 0, 0
    %p48 = scmp.lt.s32.totalorder %s47, 0
    %s49 = scalar_select %p48, %s47, 0
    %s50 = smul.u32 3, %s49
    %p51 = scmp.lt.s32.totalorder %s50, 2
    %s52 = scalar_select %p51, %s50, 2
    %s53 = scalar_lea.vmem %s1, %s52
    %s54 = sadd.s32 0, 0
    %p55 = scmp.lt.s32.totalorder %s54, 0
    %s56 = scalar_select %p55, %s54, 0
    %s57 = smul.u32 3, %s56
    %s58 = sadd.s32 0, 0
    %p59 = scmp.lt.s32.totalorder %s58, 0
    %s60 = scalar_select %p59, %s58, 0
    %s61 = smul.u32 3, %s60
    %p62 = scmp.lt.s32.totalorder %s61, 2
    %s63 = scalar_select %p62, %s61, 2
    %s64 = scalar_lea.vmem %s1, %s63
    %s65 = sadd.s32 0, 0
    %p66 = scmp.lt.s32.totalorder %s65, 0
    %s67 = scalar_select %p66, %s65, 0
    %s68 = smul.u32 3, %s67
    %p69 = scmp.eq.s32.totalorder 0, 0
    // Predicated region
    $region18: #{tpu_custom_call.1} parent=1 // pred_check
      %p70 = pneg %p69
    $region19: #{tpu_custom_call.1} parent=1 // pred_check_branch
      %72 = sbr.rel (%p70) target = $region21
    $region20: #{tpu_custom_call.1} parent=1 // pred_region
      %vm73 = vcmask 0
      %74 = vst.msk [vmem:[#allocation2] sm:$0x1] %vm73, 0.0
      %75 = vst.msk [vmem:[#allocation3] sm:$0x1] %vm73, 0.0
    $region21: #{tpu_custom_call.1} parent=1 // pred_fallthru
      _
    %v76 = vlaneseq
    %v77 = vand.u32 %v76, 127
    %v78 = vadd.s32 %v77, 128
    %v79 = vadd.s32 %v77, 256
    %s80 = sadd.s32 0, 0
    %s81 = smul.u32 %s80, 300
    %v82 = vstv %s81
    %v83 = vadd.s32 %v77, %v82
    %v84 = vadd.s32 %v78, %v82
    %v85 = vadd.s32 %v79, %v82
    %vm86 = vcmp.lt.s32.totalorder %v83, 300
    %vm87 = vcmp.lt.s32.totalorder %v84, 300
    %vm88 = vcmp.lt.s32.totalorder %v85, 300
    %v89 = vsel %vm86, 1, 0
    %v90 = vsel %vm87, 1, 0
    %v91 = vsel %vm88, 1, 0
    %v92 = vcvt.s32.f32 %v89
    %v93 = vcvt.s32.f32 %v90
    %v94 = vcvt.s32.f32 %v91
    %v95 = vld [vmem:[#allocation4] sm:$0xff]
    %v96 = vld [vmem:[#allocation4 + $0x8] sm:$0xf]
    %vm97 = vcmp.eq.s32.totalorder %v89, 1
    %vm98 = vcmp.eq.s32.totalorder %v90, 1
    %vm99 = vcmp.eq.s32.totalorder %v91, 1
    %v101 = vcombine.high %v95, %v95
    %v103 = vsel %vm97, %v95, 0.0
    %v104 = vsel %vm98, %v101, 0.0
    %v105 = vsel %vm99, %v96, 0.0
    %v106 = vld [vmem:[%s64] sm:$0x7]
    %v107 = vld [vmem:[%s2] sm:$0xf]
    %vm108 = vcmask 1043456
    %v109 = vsel %vm108, %v103, -inf
    %v110 = vrot.slane %v109, 4
    %v111 = vmax.f32 %v109, %v110
    %v112 = vrot.slane %v111, 2
    %v113 = vmax.f32 %v111, %v112
    %v114 = vrot.slane %v113, 1
    %v115 = vmax.f32 %v113, %v114
    %v116 = vsel %vm108, %v104, -inf
    %v117 = vrot.slane %v116, 4
    %v118 = vmax.f32 %v116, %v117
    %v119 = vrot.slane %v118, 2
    %v120 = vmax.f32 %v118, %v119
    %v121 = vrot.slane %v120, 1
    %v122 = vmax.f32 %v120, %v121
    %vm123 = vcmask 355328
    %v124 = vsel %vm123, %v105, -inf
    %v125 = vrot.slane %v124, 4
    %v126 = vmax.f32 %v124, %v125
    %v127 = vrot.slane %v126, 2
    %v128 = vmax.f32 %v126, %v127
    %v129 = vrot.slane %v128, 1
    %v130 = vmax.f32 %v128, %v129
    %v131 = vsub.f32 %v103, %v115
    %v132 = vsub.f32 %v104, %v122
    %v133 = vsub.f32 %v105, %v130
    %v134 = vmul.f32 %v131, 1.442695
    %v135 = vpow.pop %v134
    %v136 = vmul.f32 %v132, 1.442695
    %v137 = vpow.pop %v136
    %v138 = vmul.f32 %v133, 1.442695
    %v139 = vpow.pop %v138
    %v140 = vsel %vm108, %v135, 0.0
    %v141 = vrot.slane %v140, 4
    %v142 = vadd.f32 %v140, %v141
    %v143 = vrot.slane %v142, 2
    %v144 = vadd.f32 %v142, %v143
    %v145 = vrot.slane %v144, 1
    %v146 = vadd.f32 %v144, %v145
    %v147 = vsel %vm108, %v137, 0.0
    %v148 = vrot.slane %v147, 4
    %v149 = vadd.f32 %v147, %v148
    %v150 = vrot.slane %v149, 2
    %v151 = vadd.f32 %v149, %v150
    %v152 = vrot.slane %v151, 1
    %v153 = vadd.f32 %v151, %v152
    %v154 = vsel %vm123, %v139, 0.0
    %v155 = vrot.slane %v154, 4
    %v156 = vadd.f32 %v154, %v155
    %v157 = vrot.slane %v156, 2
    %v158 = vadd.f32 %v156, %v157
    %v159 = vrot.slane %v158, 1
    %v160 = vadd.f32 %v158, %v159
    %v161 = vlog2.pop %v146
    %v162 = vmul.f32 %v161, 0.6931472
    %v163 = vlog2.pop %v153
    %v164 = vmul.f32 %v163, 0.6931472
    %v165 = vlog2.pop %v160
    %v166 = vmul.f32 %v165, 0.6931472
    %v167 = vsub.f32 %v131, %v162
    %v168 = vsub.f32 %v132, %v164
    %v169 = vsub.f32 %v133, %v166
    %v170 = vlaneseq
    %v171 = vshrl.u32 %v170, 7
    %v172 = vlaneseq
    %v173 = vshrl.u32 %v172, 7
    %v174 = vsub.s32 0, %v173
    %v175 = vrot.slane %v106, %v174
    %v176 = vlaneseq
    %v177 = vshrl.u32 %v176, 7
    %v178 = vsub.s32 1, %v177
    %v179 = vrot.slane %v106, %v178
    %v180 = vlaneseq
    %v181 = vshrl.u32 %v180, 7
    %v182 = vsub.s32 2, %v181
    %v183 = vrot.slane %v106, %v182
    %vm184 = vcmp.eq.s32.totalorder %v171, %v175
    %vm185 = vcmp.eq.s32.totalorder %v171, %v179
    %vm186 = vcmp.eq.s32.totalorder %v171, %v183
    %v187 = vsel %vm184, 1, 0
    %v188 = vsel %vm185, 1, 0
    %v189 = vsel %vm186, 1, 0
    %v190 = vcvt.s32.f32 %v187
    %v191 = vcvt.s32.f32 %v188
    %v192 = vcvt.s32.f32 %v189
    %v193 = vmul.f32 %v190, %v167
    %v194 = vmul.f32 %v191, %v168
    %v195 = vmul.f32 %v192, %v169
    %v196 = vsel %vm108, %v193, 0.0
    %v197 = vrot.slane %v196, 4
    %v198 = vadd.f32 %v196, %v197
    %v199 = vrot.slane %v198, 2
    %v200 = vadd.f32 %v198, %v199
    %v201 = vrot.slane %v200, 1
    %v202 = vadd.f32 %v200, %v201
    %v203 = vsel %vm108, %v194, 0.0
    %v204 = vrot.slane %v203, 4
    %v205 = vadd.f32 %v203, %v204
    %v206 = vrot.slane %v205, 2
    %v207 = vadd.f32 %v205, %v206
    %v208 = vrot.slane %v207, 1
    %v209 = vadd.f32 %v207, %v208
    %v210 = vsel %vm123, %v195, 0.0
    %v211 = vrot.slane %v210, 4
    %v212 = vadd.f32 %v210, %v211
    %v213 = vrot.slane %v212, 2
    %v214 = vadd.f32 %v212, %v213
    %v215 = vrot.slane %v214, 1
    %v216 = vadd.f32 %v214, %v215
    %218 = vset.pattern.permute.xlu0 0
    %219 = vperm.xlu0 %218, %v107
    %v220 = vpop.permute.xlu0 %219
    %v222 = vmul.f32 %v190, %v220
    %v223 = vmul.f32 %v191, %v220
    %v224 = vmul.f32 %v192, %v220
    %v225 = vsel %vm108, %v222, 0.0
    %v226 = vrot.slane %v225, 4
    %v227 = vadd.f32 %v225, %v226
    %v228 = vrot.slane %v227, 2
    %v229 = vadd.f32 %v227, %v228
    %v230 = vrot.slane %v229, 1
    %v231 = vadd.f32 %v229, %v230
    %v232 = vsel %vm108, %v223, 0.0
    %v233 = vrot.slane %v232, 4
    %v234 = vadd.f32 %v232, %v233
    %v235 = vrot.slane %v234, 2
    %v236 = vadd.f32 %v234, %v235
    %v237 = vrot.slane %v236, 1
    %v238 = vadd.f32 %v236, %v237
    %v239 = vsel %vm123, %v224, 0.0
    %v240 = vrot.slane %v239, 4
    %v241 = vadd.f32 %v239, %v240
    %v242 = vrot.slane %v241, 2
    %v243 = vadd.f32 %v241, %v242
    %v244 = vrot.slane %v243, 1
    %v245 = vadd.f32 %v243, %v244
    %v246 = vld [vmem:[#allocation2] sm:$0x1]
    %v247 = vsub.f32 0.0, %v231
    %v248 = vsub.f32 0.0, %v238
    %v249 = vsub.f32 0.0, %v245
    %v250 = vmul.f32 %v247, %v202
    %v251 = vmul.f32 %v248, %v209
    %v252 = vmul.f32 %v249, %v216
    %v253 = vmul.f32 %v250, %v92
    %v254 = vmul.f32 %v251, %v93
    %v255 = vmul.f32 %v252, %v94
    %v256 = vadd.f32 %v253, %v254
    %vm257 = vcmask 359424
    %v258 = vsel %vm257, %v255, 0.0
    %v259 = vadd.f32 %v256, %v258
    %260 = vadd.xlane.f32.xlu0 %v259
    %v261 = vpop.xlane.xlu0 %260
    %v262 = vadd.f32 %v246, %v261
    %vm263 = vcmask 0
    %264 = vst.msk [vmem:[#allocation2] sm:$0x1] %vm263, %v262
    %v265 = vld [vmem:[#allocation3] sm:$0x1]
    %v266 = vmul.f32 %v231, %v92
    %v267 = vmul.f32 %v238, %v93
    %v268 = vmul.f32 %v245, %v94
    %v269 = vadd.f32 %v266, %v267
    %v270 = vsel %vm257, %v268, 0.0
    %v271 = vadd.f32 %v269, %v270
    %272 = vadd.xlane.f32.xlu0 %v271
    %v273 = vpop.xlane.xlu0 %272
    %v274 = vadd.f32 %v265, %v273
    %275 = vst.msk [vmem:[#allocation3] sm:$0x1] %vm263, %v274
    // Predicated region
    $region22: #{tpu_custom_call.1} parent=1 // pred_check
      %p276 = pneg %p69
    $region23: #{tpu_custom_call.1} parent=1 // pred_check_branch
      %278 = sbr.rel (%p276) target = $region25
    $region24: #{tpu_custom_call.1} parent=1 // pred_region
      %v279 = vld [vmem:[#allocation2] sm:$0x1]
      %v281 = vlaneseq
      %v282 = vshrl.u32 %v281, 7
      %v283 = vsub.s32 0, %v282
      %v284 = vrot.slane %v279, %v283
      %285 = vset.pattern.permute.xlu0 0
      %286 = vperm.xlu0 %285, %v284
      %v287 = vpop.permute.xlu0 %286
      %289 = vst [vmem:[#allocation7] sm:$0xff] %v287
      %v290 = vld [vmem:[#allocation3] sm:$0x1]
      %v292 = vlaneseq
      %v293 = vshrl.u32 %v292, 7
      %v294 = vsub.s32 0, %v293
      %v295 = vrot.slane %v290, %v294
      %296 = vset.pattern.permute.xlu0 0
      %297 = vperm.xlu0 %296, %v295
      %v298 = vpop.permute.xlu0 %297
      %300 = vst [vmem:[#allocation8] sm:$0xff] %v298
    $region25: #{tpu_custom_call.1} parent=1 // pred_fallthru
      _
    // Predicated region
    $region26: #{tpu_custom_call.1} parent=1 // pred_check
      _
    $region27: #{tpu_custom_call.1} parent=1 // pred_check_branch
      %302 = sbr.rel (0) target = $region29
    $region28: #{tpu_custom_call.1} parent=1 // pred_region
      %s304 = ssub.s32 128, 128
      %305 = vsyncadd [#allocation6], %s304
      %s307 = sshll.u32 [#allocation7], 4
      %s308 = int_to_ptr.vmem [resolvable:$true] %s307
      %310 = dma.vmem_to_hbm [thread:$0]  %s308, 128, %s3, [#allocation6]
    $region29: #{tpu_custom_call.1} parent=1 // pred_fallthru
      _
    // Predicated region
    $region30: #{tpu_custom_call.1} parent=1 // pred_check
      _
    $region31: #{tpu_custom_call.1} parent=1 // pred_check_branch
      %312 = sbr.rel (0) target = $region33
    $region32: #{tpu_custom_call.1} parent=1 // pred_region
      %s314 = ssub.s32 128, 128
      %315 = vsyncadd [#allocation9], %s314
      %s317 = sshll.u32 [#allocation8], 4
      %s318 = int_to_ptr.vmem [resolvable:$true] %s317
      %320 = dma.vmem_to_hbm [thread:$0]  %s318, 128, %s4, [#allocation9]
    $region33: #{tpu_custom_call.1} parent=1 // pred_fallthru
      _
    // Predicated region
    $region34: #{tpu_custom_call.1} parent=1 // pred_check
      _
    $region35: #{tpu_custom_call.1} parent=1 // pred_check_branch
      %322 = sbr.rel (0) target = $region37
    $region36: #{tpu_custom_call.1} parent=1 // pred_region
      %323 = dma.done [#allocation6], 128
    $region37: #{tpu_custom_call.1} parent=1 // pred_fallthru
      _
    // Predicated region
    $region38: #{tpu_custom_call.1} parent=1 // pred_check
      _
    $region39: #{tpu_custom_call.1} parent=1 // pred_check_branch
      %325 = sbr.rel (0) target = $region41
    $region40: #{tpu_custom_call.1} parent=1 // pred_region
      %326 = dma.done [#allocation9], 128
    $region41: #{tpu_custom_call.1} parent=1 // pred_fallthru
      _
    %327 = vsyncpa [#allocation5], 1
    %328 = vsyncpa [#allocation6], 1
    %329 = vsyncpa [#allocation9], 1

</llo_original>
